<compile_context>
chip_gen: v6e
topology: v6e:2x2x1
jax: 0.10.0
libtpu: 0.0.40
codegen_flags: <defaults>
</compile_context>

<pallas_src>
import functools

import jax
import jax.numpy as jnp
from jax import lax
from jax.experimental import pallas as pl
from jax.experimental.pallas import tpu as pltpu

LN_EPS = 1e-5  # torch.nn.LayerNorm default


def _layernorm_2heads(h, gamma, beta, half):
    """Independent per-head LayerNorm on head-packed activations h: (TB, 2*half)."""
    h1 = h[:, :half]
    h2 = h[:, half:]
    m1 = jnp.mean(h1, axis=-1, keepdims=True)
    m2 = jnp.mean(h2, axis=-1, keepdims=True)
    # Two-pass biased variance (matches torch.nn.LayerNorm exactly; avoids the
    # catastrophic-cancellation risk of the single-pass E[x^2] - E[x]^2 form).
    v1 = jnp.mean(jnp.square(h1 - m1), axis=-1, keepdims=True)
    v2 = jnp.mean(jnp.square(h2 - m2), axis=-1, keepdims=True)
    lane = lax.broadcasted_iota(jnp.int32, h.shape, 1)
    right = lane >= half
    mean = jnp.where(right, m2, m1)
    inv = jnp.where(right, lax.rsqrt(v2 + LN_EPS), lax.rsqrt(v1 + LN_EPS))
    return (h - mean) * inv * gamma + beta


def _mish(h):
    # mish(x) = x * tanh(softplus(x)) = x - 2x / ((1 + e^x)^2 + 1).
    # One EUP exp instead of exp + log + tanh.  The clamp keeps e^x finite; for
    # x > 20 the correction term is < 1e-16 so mish(x) == x to f32 precision.
    e = jnp.exp(jnp.minimum(h, 20.0))
    t = jnp.square(1.0 + e) + 1.0
    r = pl.reciprocal(t, approx=True)
    r = r * (2.0 - t * r)  # one Newton step -> full f32 accuracy
    return h - 2.0 * h * r


def _critic_kernel(obs_ref, act_ref,
                   w1o_ref, w1a_ref, b1_ref, g1_ref, be1_ref,
                   w2_ref, b2_ref, g2_ref, be2_ref,
                   w3_ref, b3_ref, g3_ref, be3_ref,
                   w4_ref, b4_ref,
                   out_ref):
    half = w4_ref.shape[-1] // 2
    bf16 = jnp.bfloat16

    # Layer 1: Linear (split obs/act inputs -> no wrapper concat) -> LN -> Tanh.
    h = (jnp.dot(obs_ref[...].astype(bf16), w1o_ref[...],
                 preferred_element_type=jnp.float32)
         + jnp.dot(act_ref[...].astype(bf16), w1a_ref[...],
                   preferred_element_type=jnp.float32)
         + b1_ref[...])
    h = jnp.tanh(_layernorm_2heads(h, g1_ref[...], be1_ref[...], half))

    # Layer 2: Linear (block-diagonal 2-head weight, single matmul) -> LN -> Mish.
    h = jnp.dot(h.astype(bf16), w2_ref[...],
                preferred_element_type=jnp.float32) + b2_ref[...]
    h = _mish(_layernorm_2heads(h, g2_ref[...], be2_ref[...], half))

    # Layer 3: Linear (block-diagonal) -> LN -> Mish.
    h = jnp.dot(h.astype(bf16), w3_ref[...],
                preferred_element_type=jnp.float32) + b3_ref[...]
    h = _mish(_layernorm_2heads(h, g3_ref[...], be3_ref[...], half))

    # Output heads: the degenerate (H, 1) Linear as a VPU multiply + per-head
    # lane reduction, kept in f32 (an MXU pass for one output column is wasted).
    hw = h * w4_ref[...]                                   # (TB, 2H) f32
    q1 = jnp.sum(hw[:, :half], axis=-1, keepdims=True)     # (TB, 1)
    q2 = jnp.sum(hw[:, half:], axis=-1, keepdims=True)     # (TB, 1)
    q = jnp.concatenate([q1, q2], axis=-1) + b4_ref[...]   # (TB, 2) + (1, 2)
    out_ref[...] = q.astype(out_ref.dtype)


def _round_up(x, m):
    return ((x + m - 1) // m) * m


def _pick_batch_tile(batch, hidden_dim):
    if batch <= 128:
        return batch  # one full-batch tile (latency-bound regime)
    # Live f32 activations ~ 3 slabs of (tb, 2H); keep them ~<= 2 MiB so the
    # kernel stays out of the vreg-spill regime.
    budget_rows = (2 << 20) // max(1, 3 * 2 * hidden_dim * 4)
    tb = 256 if budget_rows >= 256 else 128
    # Cap so the "parallel" batch axis has >= 2 grid steps (v7x megacore).
    tb = min(tb, _round_up(-(-batch // 2), 128))
    return max(128, tb)


def ddaq_critic_forward(obs, act, params):
    """Returns (q1, q2), each of shape (B, 1)."""
    B, obs_dim = obs.shape
    act_dim = act.shape[-1]
    hidden_dim = params["g1"].shape[-1] // 2

    tb = _pick_batch_tile(B, hidden_dim)
    B_pad = _round_up(B, tb)
    if B_pad != B:  # ragged batch: zero-pad instead of one huge whole-batch block
        obs = jnp.pad(obs, ((0, B_pad - B), (0, 0)))
        act = jnp.pad(act, ((0, B_pad - B), (0, 0)))
    grid = (B_pad // tb,)

    obs_spec = pl.BlockSpec((tb, obs_dim), lambda i: (i, 0))
    act_spec = pl.BlockSpec((tb, act_dim), lambda i: (i, 0))

    param_order = ["w1o", "w1a", "b1", "g1", "be1",
                   "w2", "b2", "g2", "be2",
                   "w3", "b3", "g3", "be3",
                   "w4", "b4"]
    param_vals = [params[k] for k in param_order]
    # Full-array blocks with constant index_map -> weights stay resident in
    # VMEM while obs/act/out tiles stream across the batch grid.
    # TODO(synk): add pipeline_mode=pl.Buffered(1) to these resident specs once
    # validated on the target jax build (halves weight VMEM at large hidden_dim).
    # TODO(synk): for very large hidden_dim, replace the block-diagonal (2H,2H)
    # layer-2/3 weights with two per-head (H,H) dots to halve their VMEM.
    param_specs = [pl.BlockSpec(p.shape, lambda i: (0, 0)) for p in param_vals]

    param_bytes = sum(int(p.size) * p.dtype.itemsize for p in param_vals)
    io_bytes = tb * (obs_dim + act_dim + 2) * 4
    vmem_limit = int(min(64 << 20,
                         max(32 << 20, 2 * param_bytes + 4 * io_bytes + (4 << 20))))

    out = pl.pallas_call(
        _critic_kernel,
        out_shape=jax.ShapeDtypeStruct((B_pad, 2), jnp.float32),
        grid_spec=pltpu.PrefetchScalarGridSpec(
            num_scalar_prefetch=0,
            grid=grid,
            in_specs=[obs_spec, act_spec] + param_specs,
            out_specs=pl.BlockSpec((tb, 2), lambda i: (i, 0)),
        ),
        compiler_params=pltpu.CompilerParams(
            dimension_semantics=("parallel",),     # megacore-shard batch on v7x
            vmem_limit_bytes=vmem_limit),
    )(obs, act, *param_vals)

    return out[:B, 0:1], out[:B, 1:2]


def ddaq_critic_q_min(obs, act, params):
    q1, q2 = ddaq_critic_forward(obs, act, params)
    return jnp.minimum(q1, q2)


def init_params(key, obs_dim, act_dim, hidden_dim):
    """Deterministic synthetic parameters in the packed, kernel-ready layout.

    Head packing: Q1 owns feature lanes [0, H), Q2 owns [H, 2H).
      w1o / w1a : (obs_dim, 2H) / (act_dim, 2H)  bf16  (layer-1 weight, split input)
      w2 / w3   : (2H, 2H)                       bf16  block-diagonal per-head weights
      w4        : (1, 2H)                        f32   output rows (VPU reduce path)
      biases / LayerNorm affine : (1, 2H)        f32
      b4        : (1, 2)                         f32
    """
    H = hidden_dim
    d_in = obs_dim + act_dim
    keys = jax.random.split(key, 8)
    scale = 0.1

    def rnd(k, shape):
        return scale * jax.random.normal(k, shape, dtype=jnp.float32)

    def blockdiag(wh):  # wh: (2, H, H) -> (2H, 2H) block-diagonal
        return (jnp.zeros((2 * H, 2 * H), jnp.float32)
                .at[:H, :H].set(wh[0]).at[H:, H:].set(wh[1]))

    w1 = rnd(keys[0], (d_in, 2 * H))
    params = {
        "w1o": w1[:obs_dim].astype(jnp.bfloat16),
        "w1a": w1[obs_dim:].astype(jnp.bfloat16),
        "b1":  rnd(keys[1], (1, 2 * H)),
        "g1":  jnp.ones((1, 2 * H), jnp.float32),
        "be1": jnp.zeros((1, 2 * H), jnp.float32),
        "w2":  blockdiag(rnd(keys[2], (2, H, H))).astype(jnp.bfloat16),
        "b2":  rnd(keys[3], (1, 2 * H)),
        "g2":  jnp.ones((1, 2 * H), jnp.float32),
        "be2": jnp.zeros((1, 2 * H), jnp.float32),
        "w3":  blockdiag(rnd(keys[4], (2, H, H))).astype(jnp.bfloat16),
        "b3":  rnd(keys[5], (1, 2 * H)),
        "g3":  jnp.ones((1, 2 * H), jnp.float32),
        "be3": jnp.zeros((1, 2 * H), jnp.float32),
        "w4":  rnd(keys[6], (1, 2 * H)),
        "b4":  rnd(keys[7], (1, 2)),
    }
    return params


def _reference_forward(obs, act, params, match_kernel_precision=False):
    """Pure-JAX per-head reference (same math as the PyTorch module).

    With match_kernel_precision=True, matmul operands are cast to bf16 exactly
    where the kernel does, isolating structural bugs from the intentional bf16
    rounding of the mixed-precision kernel.
    """
    H = params["g1"].shape[-1] // 2
    x = jnp.concatenate([obs, act], axis=-1)

    def dot(a, w, cast):
        dt = jnp.bfloat16 if cast else jnp.float32
        return jnp.dot(a.astype(dt), w.astype(dt),
                       preferred_element_type=jnp.float32)

    def ln(h, g, b):
        m = jnp.mean(h, axis=-1, keepdims=True)
        v = jnp.mean(jnp.square(h - m), axis=-1, keepdims=True)  # biased, like torch
        return (h - m) * lax.rsqrt(v + LN_EPS) * g + b

    def mish(h):
        return h * jnp.tanh(jnp.logaddexp(h, 0.0))

    w1 = jnp.concatenate([params["w1o"], params["w1a"]], axis=0)

    def head(idx):
        s = slice(idx * H, (idx + 1) * H)
        h = dot(x, w1[:, s], match_kernel_precision) + params["b1"][:, s]
        h = jnp.tanh(ln(h, params["g1"][:, s], params["be1"][:, s]))
        h = dot(h, params["w2"][s, s], match_kernel_precision) + params["b2"][:, s]
        h = mish(ln(h, params["g2"][:, s], params["be2"][:, s]))
        h = dot(h, params["w3"][s, s], match_kernel_precision) + params["b3"][:, s]
        h = mish(ln(h, params["g3"][:, s], params["be3"][:, s]))
        # The kernel keeps the output projection in f32 (VPU reduce), so the
        # reference does too regardless of match_kernel_precision.
        w4 = params["w4"][0, s].astype(jnp.float32)
        return jnp.dot(h, w4[:, None]) + params["b4"][0, idx]

    return head(0), head(1)


if __name__ == "__main__":
    obs_dim, act_dim, hidden_dim, batch = 24, 8, 32, 8

    key = jax.random.PRNGKey(0)
    k_obs, k_act, k_par = jax.random.split(key, 3)
    obs = jax.random.normal(k_obs, (batch, obs_dim), dtype=jnp.float32)
    act = jax.random.normal(k_act, (batch, act_dim), dtype=jnp.float32)
    params = init_params(k_par, obs_dim, act_dim, hidden_dim)

    fwd = jax.jit(functools.partial(ddaq_critic_forward, params=params))
    q1, q2 = jax.block_until_ready(fwd(obs, act))
    assert q1.shape == (batch, 1) and q2.shape == (batch, 1)

    # Tight check vs. a precision-matched reference (structural correctness).
    r1m, r2m = _reference_forward(obs, act, params, match_kernel_precision=True)
    assert jnp.allclose(q1, r1m, atol=1e-4, rtol=1e-4)
    assert jnp.allclose(q2, r2m, atol=1e-4, rtol=1e-4)

    # Loose check vs. the full-f32 reference (bounds bf16 matmul-input rounding).
    r1f, r2f = _reference_forward(obs, act, params, match_kernel_precision=False)
    assert jnp.allclose(q1, r1f, atol=3e-2, rtol=3e-2)
    assert jnp.allclose(q2, r2f, atol=3e-2, rtol=3e-2)

    qmin = jax.block_until_ready(ddaq_critic_q_min(obs, act, params))
    assert qmin.shape == (batch, 1)
    assert jnp.allclose(qmin, jnp.minimum(r1m, r2m), atol=1e-4, rtol=1e-4)

    print("KERNEL_OK")
</pallas_src>

<mosaic_0001>
module attributes {stable_mosaic.version = 11 : i64} {
  func.func @_critic_kernel(%arg0: i32, %arg1: memref<8x24xf32, #tpu.memory_space<vmem>>, %arg2: memref<8x8xf32, #tpu.memory_space<vmem>>, %arg3: memref<24x64xbf16, #tpu.memory_space<vmem>>, %arg4: memref<8x64xbf16, #tpu.memory_space<vmem>>, %arg5: memref<1x64xf32, #tpu.memory_space<vmem>>, %arg6: memref<1x64xf32, #tpu.memory_space<vmem>>, %arg7: memref<1x64xf32, #tpu.memory_space<vmem>>, %arg8: memref<64x64xbf16, #tpu.memory_space<vmem>>, %arg9: memref<1x64xf32, #tpu.memory_space<vmem>>, %arg10: memref<1x64xf32, #tpu.memory_space<vmem>>, %arg11: memref<1x64xf32, #tpu.memory_space<vmem>>, %arg12: memref<64x64xbf16, #tpu.memory_space<vmem>>, %arg13: memref<1x64xf32, #tpu.memory_space<vmem>>, %arg14: memref<1x64xf32, #tpu.memory_space<vmem>>, %arg15: memref<1x64xf32, #tpu.memory_space<vmem>>, %arg16: memref<1x64xf32, #tpu.memory_space<vmem>>, %arg17: memref<1x2xf32, #tpu.memory_space<vmem>>, %arg18: memref<8x2xf32, #tpu.memory_space<vmem>>) attributes {dimension_semantics = [#tpu.dimension_semantics<parallel>], iteration_bounds = array<i64: 1>, scalar_prefetch = 0 : i64, scratch_operands = 0 : i64, tpu.core_type = #tpu.core_type<tc>, window_params = [{transform_indices = @transform_0, window_bounds = array<i64: 8, 24>}, {transform_indices = @transform_1, window_bounds = array<i64: 8, 8>}, {pipeline_mode = #tpu.pipeline_mode<synchronous>, transform_indices = @transform_2, window_bounds = array<i64: 24, 64>}, {pipeline_mode = #tpu.pipeline_mode<synchronous>, transform_indices = @transform_3, window_bounds = array<i64: 8, 64>}, {pipeline_mode = #tpu.pipeline_mode<synchronous>, transform_indices = @transform_4, window_bounds = array<i64: 1, 64>}, {pipeline_mode = #tpu.pipeline_mode<synchronous>, transform_indices = @transform_5, window_bounds = array<i64: 1, 64>}, {pipeline_mode = #tpu.pipeline_mode<synchronous>, transform_indices = @transform_6, window_bounds = array<i64: 1, 64>}, {pipeline_mode = #tpu.pipeline_mode<synchronous>, transform_indices = @transform_7, window_bounds = array<i64: 64, 64>}, {pipeline_mode = #tpu.pipeline_mode<synchronous>, transform_indices = @transform_8, window_bounds = array<i64: 1, 64>}, {pipeline_mode = #tpu.pipeline_mode<synchronous>, transform_indices = @transform_9, window_bounds = array<i64: 1, 64>}, {pipeline_mode = #tpu.pipeline_mode<synchronous>, transform_indices = @transform_10, window_bounds = array<i64: 1, 64>}, {pipeline_mode = #tpu.pipeline_mode<synchronous>, transform_indices = @transform_11, window_bounds = array<i64: 64, 64>}, {pipeline_mode = #tpu.pipeline_mode<synchronous>, transform_indices = @transform_12, window_bounds = array<i64: 1, 64>}, {pipeline_mode = #tpu.pipeline_mode<synchronous>, transform_indices = @transform_13, window_bounds = array<i64: 1, 64>}, {pipeline_mode = #tpu.pipeline_mode<synchronous>, transform_indices = @transform_14, window_bounds = array<i64: 1, 64>}, {pipeline_mode = #tpu.pipeline_mode<synchronous>, transform_indices = @transform_15, window_bounds = array<i64: 1, 64>}, {pipeline_mode = #tpu.pipeline_mode<synchronous>, transform_indices = @transform_16, window_bounds = array<i64: 1, 2>}, {transform_indices = @transform_17, window_bounds = array<i64: 8, 2>}]} {
    %c0 = arith.constant 0 : index
    %c0_0 = arith.constant 0 : index
    %0 = vector.load %arg1[%c0, %c0_0] : memref<8x24xf32, #tpu.memory_space<vmem>>, vector<8x24xf32>
    %1 = arith.truncf %0 : vector<8x24xf32> to vector<8x24xbf16>
    %c0_1 = arith.constant 0 : index
    %c0_2 = arith.constant 0 : index
    %2 = vector.load %arg3[%c0_1, %c0_2] : memref<24x64xbf16, #tpu.memory_space<vmem>>, vector<24x64xbf16>
    %cst = arith.constant dense<0.000000e+00> : vector<8x64xf32>
    %3 = tpu.matmul %1, %2, %cst {dimension_numbers = #tpu.dot_dimension_numbers<[1], [0], [0], [1], [0, 0, 1, 1], [], []>} : vector<8x24xbf16>, vector<24x64xbf16>, vector<8x64xf32> -> vector<8x64xf32>
    %c0_3 = arith.constant 0 : index
    %c0_4 = arith.constant 0 : index
    %4 = vector.load %arg2[%c0_3, %c0_4] : memref<8x8xf32, #tpu.memory_space<vmem>>, vector<8x8xf32>
    %5 = arith.truncf %4 : vector<8x8xf32> to vector<8x8xbf16>
    %c0_5 = arith.constant 0 : index
    %c0_6 = arith.constant 0 : index
    %6 = vector.load %arg4[%c0_5, %c0_6] : memref<8x64xbf16, #tpu.memory_space<vmem>>, vector<8x64xbf16>
    %cst_7 = arith.constant dense<0.000000e+00> : vector<8x64xf32>
    %7 = tpu.matmul %5, %6, %cst_7 {dimension_numbers = #tpu.dot_dimension_numbers<[1], [0], [0], [1], [0, 0, 1, 1], [], []>} : vector<8x8xbf16>, vector<8x64xbf16>, vector<8x64xf32> -> vector<8x64xf32>
    %8 = arith.addf %3, %7 : vector<8x64xf32>
    %c0_8 = arith.constant 0 : index
    %c0_9 = arith.constant 0 : index
    %9 = vector.load %arg5[%c0_8, %c0_9] : memref<1x64xf32, #tpu.memory_space<vmem>>, vector<1x64xf32>
    %10 = vector.broadcast %9 : vector<1x64xf32> to vector<8x64xf32>
    %11 = arith.addf %8, %10 : vector<8x64xf32>
    %c0_10 = arith.constant 0 : index
    %c0_11 = arith.constant 0 : index
    %12 = vector.load %arg6[%c0_10, %c0_11] : memref<1x64xf32, #tpu.memory_space<vmem>>, vector<1x64xf32>
    %c0_12 = arith.constant 0 : index
    %c0_13 = arith.constant 0 : index
    %13 = vector.load %arg7[%c0_12, %c0_13] : memref<1x64xf32, #tpu.memory_space<vmem>>, vector<1x64xf32>
    %14 = vector.extract_strided_slice %11 {offsets = [0, 0], sizes = [8, 32], strides = [1, 1]} : vector<8x64xf32> to vector<8x32xf32>
    %15 = vector.extract_strided_slice %11 {offsets = [0, 32], sizes = [8, 32], strides = [1, 1]} : vector<8x64xf32> to vector<8x32xf32>
    %cst_14 = arith.constant dense<0.000000e+00> : vector<8xf32>
    %16 = vector.multi_reduction <add>, %14, %cst_14 [1] : vector<8x32xf32> to vector<8xf32>
    %17 = vector.shape_cast %16 : vector<8xf32> to vector<8x1xf32>
    %cst_15 = arith.constant 3.200000e+01 : f32
    %18 = vector.broadcast %cst_15 : f32 to vector<8x1xf32>
    %19 = arith.divf %17, %18 : vector<8x1xf32>
    %cst_16 = arith.constant dense<0.000000e+00> : vector<8xf32>
    %20 = vector.multi_reduction <add>, %15, %cst_16 [1] : vector<8x32xf32> to vector<8xf32>
    %21 = vector.shape_cast %20 : vector<8xf32> to vector<8x1xf32>
    %cst_17 = arith.constant 3.200000e+01 : f32
    %22 = vector.broadcast %cst_17 : f32 to vector<8x1xf32>
    %23 = arith.divf %21, %22 : vector<8x1xf32>
    %24 = vector.broadcast %19 : vector<8x1xf32> to vector<8x32xf32>
    %25 = arith.subf %14, %24 : vector<8x32xf32>
    %26 = arith.mulf %25, %25 : vector<8x32xf32>
    %cst_18 = arith.constant dense<0.000000e+00> : vector<8xf32>
    %27 = vector.multi_reduction <add>, %26, %cst_18 [1] : vector<8x32xf32> to vector<8xf32>
    %28 = vector.shape_cast %27 : vector<8xf32> to vector<8x1xf32>
    %cst_19 = arith.constant 3.200000e+01 : f32
    %29 = vector.broadcast %cst_19 : f32 to vector<8x1xf32>
    %30 = arith.divf %28, %29 : vector<8x1xf32>
    %31 = vector.broadcast %23 : vector<8x1xf32> to vector<8x32xf32>
    %32 = arith.subf %15, %31 : vector<8x32xf32>
    %33 = arith.mulf %32, %32 : vector<8x32xf32>
    %cst_20 = arith.constant dense<0.000000e+00> : vector<8xf32>
    %34 = vector.multi_reduction <add>, %33, %cst_20 [1] : vector<8x32xf32> to vector<8xf32>
    %35 = vector.shape_cast %34 : vector<8xf32> to vector<8x1xf32>
    %cst_21 = arith.constant 3.200000e+01 : f32
    %36 = vector.broadcast %cst_21 : f32 to vector<8x1xf32>
    %37 = arith.divf %35, %36 : vector<8x1xf32>
    %38 = tpu.iota {dimensions = array<i32: 1>} : vector<8x64xi32>
    %c32_i32 = arith.constant 32 : i32
    %39 = vector.broadcast %c32_i32 : i32 to vector<8x64xi32>
    %40 = arith.cmpi sge, %38, %39 : vector<8x64xi32>
    %41 = vector.shape_cast %23 : vector<8x1xf32> to vector<8x1xf32>
    %42 = vector.broadcast %41 : vector<8x1xf32> to vector<8x64xf32>
    %43 = vector.shape_cast %19 : vector<8x1xf32> to vector<8x1xf32>
    %44 = vector.broadcast %43 : vector<8x1xf32> to vector<8x64xf32>
    %45 = arith.select %40, %42, %44 : vector<8x64xi1>, vector<8x64xf32>
    %cst_22 = arith.constant 9.99999974E-6 : f32
    %46 = vector.broadcast %cst_22 : f32 to vector<8x1xf32>
    %47 = arith.addf %37, %46 : vector<8x1xf32>
    %48 = math.rsqrt %47 : vector<8x1xf32>
    %cst_23 = arith.constant 9.99999974E-6 : f32
    %49 = vector.broadcast %cst_23 : f32 to vector<8x1xf32>
    %50 = arith.addf %30, %49 : vector<8x1xf32>
    %51 = math.rsqrt %50 : vector<8x1xf32>
    %52 = vector.shape_cast %48 : vector<8x1xf32> to vector<8x1xf32>
    %53 = vector.broadcast %52 : vector<8x1xf32> to vector<8x64xf32>
    %54 = vector.shape_cast %51 : vector<8x1xf32> to vector<8x1xf32>
    %55 = vector.broadcast %54 : vector<8x1xf32> to vector<8x64xf32>
    %56 = arith.select %40, %53, %55 : vector<8x64xi1>, vector<8x64xf32>
    %57 = arith.subf %11, %45 : vector<8x64xf32>
    %58 = arith.mulf %57, %56 : vector<8x64xf32>
    %59 = vector.broadcast %12 : vector<1x64xf32> to vector<8x64xf32>
    %60 = arith.mulf %58, %59 : vector<8x64xf32>
    %61 = vector.broadcast %13 : vector<1x64xf32> to vector<8x64xf32>
    %62 = arith.addf %60, %61 : vector<8x64xf32>
    %63 = math.tanh %62 : vector<8x64xf32>
    %64 = arith.truncf %63 : vector<8x64xf32> to vector<8x64xbf16>
    %c0_24 = arith.constant 0 : index
    %c0_25 = arith.constant 0 : index
    %65 = vector.load %arg8[%c0_24, %c0_25] : memref<64x64xbf16, #tpu.memory_space<vmem>>, vector<64x64xbf16>
    %cst_26 = arith.constant dense<0.000000e+00> : vector<8x64xf32>
    %66 = tpu.matmul %64, %65, %cst_26 {dimension_numbers = #tpu.dot_dimension_numbers<[1], [0], [0], [1], [0, 0, 1, 1], [], []>} : vector<8x64xbf16>, vector<64x64xbf16>, vector<8x64xf32> -> vector<8x64xf32>
    %c0_27 = arith.constant 0 : index
    %c0_28 = arith.constant 0 : index
    %67 = vector.load %arg9[%c0_27, %c0_28] : memref<1x64xf32, #tpu.memory_space<vmem>>, vector<1x64xf32>
    %68 = vector.broadcast %67 : vector<1x64xf32> to vector<8x64xf32>
    %69 = arith.addf %66, %68 : vector<8x64xf32>
    %c0_29 = arith.constant 0 : index
    %c0_30 = arith.constant 0 : index
    %70 = vector.load %arg10[%c0_29, %c0_30] : memref<1x64xf32, #tpu.memory_space<vmem>>, vector<1x64xf32>
    %c0_31 = arith.constant 0 : index
    %c0_32 = arith.constant 0 : index
    %71 = vector.load %arg11[%c0_31, %c0_32] : memref<1x64xf32, #tpu.memory_space<vmem>>, vector<1x64xf32>
    %72 = vector.extract_strided_slice %69 {offsets = [0, 0], sizes = [8, 32], strides = [1, 1]} : vector<8x64xf32> to vector<8x32xf32>
    %73 = vector.extract_strided_slice %69 {offsets = [0, 32], sizes = [8, 32], strides = [1, 1]} : vector<8x64xf32> to vector<8x32xf32>
    %cst_33 = arith.constant dense<0.000000e+00> : vector<8xf32>
    %74 = vector.multi_reduction <add>, %72, %cst_33 [1] : vector<8x32xf32> to vector<8xf32>
    %75 = vector.shape_cast %74 : vector<8xf32> to vector<8x1xf32>
    %cst_34 = arith.constant 3.200000e+01 : f32
    %76 = vector.broadcast %cst_34 : f32 to vector<8x1xf32>
    %77 = arith.divf %75, %76 : vector<8x1xf32>
    %cst_35 = arith.constant dense<0.000000e+00> : vector<8xf32>
    %78 = vector.multi_reduction <add>, %73, %cst_35 [1] : vector<8x32xf32> to vector<8xf32>
    %79 = vector.shape_cast %78 : vector<8xf32> to vector<8x1xf32>
    %cst_36 = arith.constant 3.200000e+01 : f32
    %80 = vector.broadcast %cst_36 : f32 to vector<8x1xf32>
    %81 = arith.divf %79, %80 : vector<8x1xf32>
    %82 = vector.broadcast %77 : vector<8x1xf32> to vector<8x32xf32>
    %83 = arith.subf %72, %82 : vector<8x32xf32>
    %84 = arith.mulf %83, %83 : vector<8x32xf32>
    %cst_37 = arith.constant dense<0.000000e+00> : vector<8xf32>
    %85 = vector.multi_reduction <add>, %84, %cst_37 [1] : vector<8x32xf32> to vector<8xf32>
    %86 = vector.shape_cast %85 : vector<8xf32> to vector<8x1xf32>
    %cst_38 = arith.constant 3.200000e+01 : f32
    %87 = vector.broadcast %cst_38 : f32 to vector<8x1xf32>
    %88 = arith.divf %86, %87 : vector<8x1xf32>
    %89 = vector.broadcast %81 : vector<8x1xf32> to vector<8x32xf32>
    %90 = arith.subf %73, %89 : vector<8x32xf32>
    %91 = arith.mulf %90, %90 : vector<8x32xf32>
    %cst_39 = arith.constant dense<0.000000e+00> : vector<8xf32>
    %92 = vector.multi_reduction <add>, %91, %cst_39 [1] : vector<8x32xf32> to vector<8xf32>
    %93 = vector.shape_cast %92 : vector<8xf32> to vector<8x1xf32>
    %cst_40 = arith.constant 3.200000e+01 : f32
    %94 = vector.broadcast %cst_40 : f32 to vector<8x1xf32>
    %95 = arith.divf %93, %94 : vector<8x1xf32>
    %96 = tpu.iota {dimensions = array<i32: 1>} : vector<8x64xi32>
    %c32_i32_41 = arith.constant 32 : i32
    %97 = vector.broadcast %c32_i32_41 : i32 to vector<8x64xi32>
    %98 = arith.cmpi sge, %96, %97 : vector<8x64xi32>
    %99 = vector.shape_cast %81 : vector<8x1xf32> to vector<8x1xf32>
    %100 = vector.broadcast %99 : vector<8x1xf32> to vector<8x64xf32>
    %101 = vector.shape_cast %77 : vector<8x1xf32> to vector<8x1xf32>
    %102 = vector.broadcast %101 : vector<8x1xf32> to vector<8x64xf32>
    %103 = arith.select %98, %100, %102 : vector<8x64xi1>, vector<8x64xf32>
    %cst_42 = arith.constant 9.99999974E-6 : f32
    %104 = vector.broadcast %cst_42 : f32 to vector<8x1xf32>
    %105 = arith.addf %95, %104 : vector<8x1xf32>
    %106 = math.rsqrt %105 : vector<8x1xf32>
    %cst_43 = arith.constant 9.99999974E-6 : f32
    %107 = vector.broadcast %cst_43 : f32 to vector<8x1xf32>
    %108 = arith.addf %88, %107 : vector<8x1xf32>
    %109 = math.rsqrt %108 : vector<8x1xf32>
    %110 = vector.shape_cast %106 : vector<8x1xf32> to vector<8x1xf32>
    %111 = vector.broadcast %110 : vector<8x1xf32> to vector<8x64xf32>
    %112 = vector.shape_cast %109 : vector<8x1xf32> to vector<8x1xf32>
    %113 = vector.broadcast %112 : vector<8x1xf32> to vector<8x64xf32>
    %114 = arith.select %98, %111, %113 : vector<8x64xi1>, vector<8x64xf32>
    %115 = arith.subf %69, %103 : vector<8x64xf32>
    %116 = arith.mulf %115, %114 : vector<8x64xf32>
    %117 = vector.broadcast %70 : vector<1x64xf32> to vector<8x64xf32>
    %118 = arith.mulf %116, %117 : vector<8x64xf32>
    %119 = vector.broadcast %71 : vector<1x64xf32> to vector<8x64xf32>
    %120 = arith.addf %118, %119 : vector<8x64xf32>
    %cst_44 = arith.constant 2.000000e+01 : f32
    %121 = vector.broadcast %cst_44 : f32 to vector<8x64xf32>
    %122 = arith.minimumf %120, %121 : vector<8x64xf32>
    %123 = math.exp %122 : vector<8x64xf32>
    %cst_45 = arith.constant 1.000000e+00 : f32
    %124 = vector.broadcast %cst_45 : f32 to vector<8x64xf32>
    %125 = arith.addf %124, %123 : vector<8x64xf32>
    %126 = arith.mulf %125, %125 : vector<8x64xf32>
    %cst_46 = arith.constant 1.000000e+00 : f32
    %127 = vector.broadcast %cst_46 : f32 to vector<8x64xf32>
    %128 = arith.addf %126, %127 : vector<8x64xf32>
    %129 = tpu.reciprocal %128 {approx = true} : vector<8x64xf32> -> vector<8x64xf32>
    %130 = arith.mulf %128, %129 : vector<8x64xf32>
    %cst_47 = arith.constant 2.000000e+00 : f32
    %131 = vector.broadcast %cst_47 : f32 to vector<8x64xf32>
    %132 = arith.subf %131, %130 : vector<8x64xf32>
    %133 = arith.mulf %129, %132 : vector<8x64xf32>
    %cst_48 = arith.constant 2.000000e+00 : f32
    %134 = vector.broadcast %cst_48 : f32 to vector<8x64xf32>
    %135 = arith.mulf %134, %120 : vector<8x64xf32>
    %136 = arith.mulf %135, %133 : vector<8x64xf32>
    %137 = arith.subf %120, %136 : vector<8x64xf32>
    %138 = arith.truncf %137 : vector<8x64xf32> to vector<8x64xbf16>
    %c0_49 = arith.constant 0 : index
    %c0_50 = arith.constant 0 : index
    %139 = vector.load %arg12[%c0_49, %c0_50] : memref<64x64xbf16, #tpu.memory_space<vmem>>, vector<64x64xbf16>
    %cst_51 = arith.constant dense<0.000000e+00> : vector<8x64xf32>
    %140 = tpu.matmul %138, %139, %cst_51 {dimension_numbers = #tpu.dot_dimension_numbers<[1], [0], [0], [1], [0, 0, 1, 1], [], []>} : vector<8x64xbf16>, vector<64x64xbf16>, vector<8x64xf32> -> vector<8x64xf32>
    %c0_52 = arith.constant 0 : index
    %c0_53 = arith.constant 0 : index
    %141 = vector.load %arg13[%c0_52, %c0_53] : memref<1x64xf32, #tpu.memory_space<vmem>>, vector<1x64xf32>
    %142 = vector.broadcast %141 : vector<1x64xf32> to vector<8x64xf32>
    %143 = arith.addf %140, %142 : vector<8x64xf32>
    %c0_54 = arith.constant 0 : index
    %c0_55 = arith.constant 0 : index
    %144 = vector.load %arg14[%c0_54, %c0_55] : memref<1x64xf32, #tpu.memory_space<vmem>>, vector<1x64xf32>
    %c0_56 = arith.constant 0 : index
    %c0_57 = arith.constant 0 : index
    %145 = vector.load %arg15[%c0_56, %c0_57] : memref<1x64xf32, #tpu.memory_space<vmem>>, vector<1x64xf32>
    %146 = vector.extract_strided_slice %143 {offsets = [0, 0], sizes = [8, 32], strides = [1, 1]} : vector<8x64xf32> to vector<8x32xf32>
    %147 = vector.extract_strided_slice %143 {offsets = [0, 32], sizes = [8, 32], strides = [1, 1]} : vector<8x64xf32> to vector<8x32xf32>
    %cst_58 = arith.constant dense<0.000000e+00> : vector<8xf32>
    %148 = vector.multi_reduction <add>, %146, %cst_58 [1] : vector<8x32xf32> to vector<8xf32>
    %149 = vector.shape_cast %148 : vector<8xf32> to vector<8x1xf32>
    %cst_59 = arith.constant 3.200000e+01 : f32
    %150 = vector.broadcast %cst_59 : f32 to vector<8x1xf32>
    %151 = arith.divf %149, %150 : vector<8x1xf32>
    %cst_60 = arith.constant dense<0.000000e+00> : vector<8xf32>
    %152 = vector.multi_reduction <add>, %147, %cst_60 [1] : vector<8x32xf32> to vector<8xf32>
    %153 = vector.shape_cast %152 : vector<8xf32> to vector<8x1xf32>
    %cst_61 = arith.constant 3.200000e+01 : f32
    %154 = vector.broadcast %cst_61 : f32 to vector<8x1xf32>
    %155 = arith.divf %153, %154 : vector<8x1xf32>
    %156 = vector.broadcast %151 : vector<8x1xf32> to vector<8x32xf32>
    %157 = arith.subf %146, %156 : vector<8x32xf32>
    %158 = arith.mulf %157, %157 : vector<8x32xf32>
    %cst_62 = arith.constant dense<0.000000e+00> : vector<8xf32>
    %159 = vector.multi_reduction <add>, %158, %cst_62 [1] : vector<8x32xf32> to vector<8xf32>
    %160 = vector.shape_cast %159 : vector<8xf32> to vector<8x1xf32>
    %cst_63 = arith.constant 3.200000e+01 : f32
    %161 = vector.broadcast %cst_63 : f32 to vector<8x1xf32>
    %162 = arith.divf %160, %161 : vector<8x1xf32>
    %163 = vector.broadcast %155 : vector<8x1xf32> to vector<8x32xf32>
    %164 = arith.subf %147, %163 : vector<8x32xf32>
    %165 = arith.mulf %164, %164 : vector<8x32xf32>
    %cst_64 = arith.constant dense<0.000000e+00> : vector<8xf32>
    %166 = vector.multi_reduction <add>, %165, %cst_64 [1] : vector<8x32xf32> to vector<8xf32>
    %167 = vector.shape_cast %166 : vector<8xf32> to vector<8x1xf32>
    %cst_65 = arith.constant 3.200000e+01 : f32
    %168 = vector.broadcast %cst_65 : f32 to vector<8x1xf32>
    %169 = arith.divf %167, %168 : vector<8x1xf32>
    %170 = tpu.iota {dimensions = array<i32: 1>} : vector<8x64xi32>
    %c32_i32_66 = arith.constant 32 : i32
    %171 = vector.broadcast %c32_i32_66 : i32 to vector<8x64xi32>
    %172 = arith.cmpi sge, %170, %171 : vector<8x64xi32>
    %173 = vector.shape_cast %155 : vector<8x1xf32> to vector<8x1xf32>
    %174 = vector.broadcast %173 : vector<8x1xf32> to vector<8x64xf32>
    %175 = vector.shape_cast %151 : vector<8x1xf32> to vector<8x1xf32>
    %176 = vector.broadcast %175 : vector<8x1xf32> to vector<8x64xf32>
    %177 = arith.select %172, %174, %176 : vector<8x64xi1>, vector<8x64xf32>
    %cst_67 = arith.constant 9.99999974E-6 : f32
    %178 = vector.broadcast %cst_67 : f32 to vector<8x1xf32>
    %179 = arith.addf %169, %178 : vector<8x1xf32>
    %180 = math.rsqrt %179 : vector<8x1xf32>
    %cst_68 = arith.constant 9.99999974E-6 : f32
    %181 = vector.broadcast %cst_68 : f32 to vector<8x1xf32>
    %182 = arith.addf %162, %181 : vector<8x1xf32>
    %183 = math.rsqrt %182 : vector<8x1xf32>
    %184 = vector.shape_cast %180 : vector<8x1xf32> to vector<8x1xf32>
    %185 = vector.broadcast %184 : vector<8x1xf32> to vector<8x64xf32>
    %186 = vector.shape_cast %183 : vector<8x1xf32> to vector<8x1xf32>
    %187 = vector.broadcast %186 : vector<8x1xf32> to vector<8x64xf32>
    %188 = arith.select %172, %185, %187 : vector<8x64xi1>, vector<8x64xf32>
    %189 = arith.subf %143, %177 : vector<8x64xf32>
    %190 = arith.mulf %189, %188 : vector<8x64xf32>
    %191 = vector.broadcast %144 : vector<1x64xf32> to vector<8x64xf32>
    %192 = arith.mulf %190, %191 : vector<8x64xf32>
    %193 = vector.broadcast %145 : vector<1x64xf32> to vector<8x64xf32>
    %194 = arith.addf %192, %193 : vector<8x64xf32>
    %cst_69 = arith.constant 2.000000e+01 : f32
    %195 = vector.broadcast %cst_69 : f32 to vector<8x64xf32>
    %196 = arith.minimumf %194, %195 : vector<8x64xf32>
    %197 = math.exp %196 : vector<8x64xf32>
    %cst_70 = arith.constant 1.000000e+00 : f32
    %198 = vector.broadcast %cst_70 : f32 to vector<8x64xf32>
    %199 = arith.addf %198, %197 : vector<8x64xf32>
    %200 = arith.mulf %199, %199 : vector<8x64xf32>
    %cst_71 = arith.constant 1.000000e+00 : f32
    %201 = vector.broadcast %cst_71 : f32 to vector<8x64xf32>
    %202 = arith.addf %200, %201 : vector<8x64xf32>
    %203 = tpu.reciprocal %202 {approx = true} : vector<8x64xf32> -> vector<8x64xf32>
    %204 = arith.mulf %202, %203 : vector<8x64xf32>
    %cst_72 = arith.constant 2.000000e+00 : f32
    %205 = vector.broadcast %cst_72 : f32 to vector<8x64xf32>
    %206 = arith.subf %205, %204 : vector<8x64xf32>
    %207 = arith.mulf %203, %206 : vector<8x64xf32>
    %cst_73 = arith.constant 2.000000e+00 : f32
    %208 = vector.broadcast %cst_73 : f32 to vector<8x64xf32>
    %209 = arith.mulf %208, %194 : vector<8x64xf32>
    %210 = arith.mulf %209, %207 : vector<8x64xf32>
    %211 = arith.subf %194, %210 : vector<8x64xf32>
    %c0_74 = arith.constant 0 : index
    %c0_75 = arith.constant 0 : index
    %212 = vector.load %arg16[%c0_74, %c0_75] : memref<1x64xf32, #tpu.memory_space<vmem>>, vector<1x64xf32>
    %213 = vector.broadcast %212 : vector<1x64xf32> to vector<8x64xf32>
    %214 = arith.mulf %211, %213 : vector<8x64xf32>
    %215 = vector.extract_strided_slice %214 {offsets = [0, 0], sizes = [8, 32], strides = [1, 1]} : vector<8x64xf32> to vector<8x32xf32>
    %cst_76 = arith.constant dense<0.000000e+00> : vector<8xf32>
    %216 = vector.multi_reduction <add>, %215, %cst_76 [1] : vector<8x32xf32> to vector<8xf32>
    %217 = vector.shape_cast %216 : vector<8xf32> to vector<8x1xf32>
    %218 = vector.extract_strided_slice %214 {offsets = [0, 32], sizes = [8, 32], strides = [1, 1]} : vector<8x64xf32> to vector<8x32xf32>
    %cst_77 = arith.constant dense<0.000000e+00> : vector<8xf32>
    %219 = vector.multi_reduction <add>, %218, %cst_77 [1] : vector<8x32xf32> to vector<8xf32>
    %220 = vector.shape_cast %219 : vector<8xf32> to vector<8x1xf32>
    %221 = tpu.concatenate %217, %220 in 1 : vector<8x1xf32>, vector<8x1xf32> -> vector<8x2xf32>
    %c0_78 = arith.constant 0 : index
    %c0_79 = arith.constant 0 : index
    %222 = vector.load %arg17[%c0_78, %c0_79] : memref<1x2xf32, #tpu.memory_space<vmem>>, vector<1x2xf32>
    %223 = vector.broadcast %222 : vector<1x2xf32> to vector<8x2xf32>
    %224 = arith.addf %221, %223 : vector<8x2xf32>
    %c0_80 = arith.constant 0 : index
    %c0_81 = arith.constant 0 : index
    %225 = vector.load %arg18[%c0_80, %c0_81] : memref<8x2xf32, #tpu.memory_space<vmem>>, vector<8x2xf32>
    tpu.vector_store %arg18[%c0_80, %c0_81], %224 {strides = array<i32>} : memref<8x2xf32, #tpu.memory_space<vmem>>, vector<8x2xf32>,
    return
  }
  func.func @transform_0(%arg0: i32) -> (i32, i32) {
    %c0_i32 = arith.constant 0 : i32
    %c0_i32_0 = arith.constant 0 : i32
    return %arg0, %c0_i32 : i32, i32
  }
  func.func @transform_1(%arg0: i32) -> (i32, i32) {
    %c0_i32 = arith.constant 0 : i32
    %c0_i32_0 = arith.constant 0 : i32
    return %arg0, %c0_i32 : i32, i32
  }
  func.func @transform_2(%arg0: i32) -> (i32, i32) {
    %c0_i32 = arith.constant 0 : i32
    %c0_i32_0 = arith.constant 0 : i32
    %c0_i32_1 = arith.constant 0 : i32
    return %c0_i32, %c0_i32_0 : i32, i32
  }
  func.func @transform_3(%arg0: i32) -> (i32, i32) {
    %c0_i32 = arith.constant 0 : i32
    %c0_i32_0 = arith.constant 0 : i32
    %c0_i32_1 = arith.constant 0 : i32
    return %c0_i32, %c0_i32_0 : i32, i32
  }
  func.func @transform_4(%arg0: i32) -> (i32, i32) {
    %c0_i32 = arith.constant 0 : i32
    %c0_i32_0 = arith.constant 0 : i32
    %c0_i32_1 = arith.constant 0 : i32
    return %c0_i32, %c0_i32_0 : i32, i32
  }
  func.func @transform_5(%arg0: i32) -> (i32, i32) {
    %c0_i32 = arith.constant 0 : i32
    %c0_i32_0 = arith.constant 0 : i32
    %c0_i32_1 = arith.constant 0 : i32
    return %c0_i32, %c0_i32_0 : i32, i32
  }
  func.func @transform_6(%arg0: i32) -> (i32, i32) {
    %c0_i32 = arith.constant 0 : i32
    %c0_i32_0 = arith.constant 0 : i32
    %c0_i32_1 = arith.constant 0 : i32
    return %c0_i32, %c0_i32_0 : i32, i32
  }
  func.func @transform_7(%arg0: i32) -> (i32, i32) {
    %c0_i32 = arith.constant 0 : i32
    %c0_i32_0 = arith.constant 0 : i32
    %c0_i32_1 = arith.constant 0 : i32
    return %c0_i32, %c0_i32_0 : i32, i32
  }
  func.func @transform_8(%arg0: i32) -> (i32, i32) {
    %c0_i32 = arith.constant 0 : i32
    %c0_i32_0 = arith.constant 0 : i32
    %c0_i32_1 = arith.constant 0 : i32
    return %c0_i32, %c0_i32_0 : i32, i32
  }
  func.func @transform_9(%arg0: i32) -> (i32, i32) {
    %c0_i32 = arith.constant 0 : i32
    %c0_i32_0 = arith.constant 0 : i32
    %c0_i32_1 = arith.constant 0 : i32
    return %c0_i32, %c0_i32_0 : i32, i32
  }
  func.func @transform_10(%arg0: i32) -> (i32, i32) {
    %c0_i32 = arith.constant 0 : i32
    %c0_i32_0 = arith.constant 0 : i32
    %c0_i32_1 = arith.constant 0 : i32
    return %c0_i32, %c0_i32_0 : i32, i32
  }
  func.func @transform_11(%arg0: i32) -> (i32, i32) {
    %c0_i32 = arith.constant 0 : i32
    %c0_i32_0 = arith.constant 0 : i32
    %c0_i32_1 = arith.constant 0 : i32
    return %c0_i32, %c0_i32_0 : i32, i32
  }
  func.func @transform_12(%arg0: i32) -> (i32, i32) {
    %c0_i32 = arith.constant 0 : i32
    %c0_i32_0 = arith.constant 0 : i32
    %c0_i32_1 = arith.constant 0 : i32
    return %c0_i32, %c0_i32_0 : i32, i32
  }
  func.func @transform_13(%arg0: i32) -> (i32, i32) {
    %c0_i32 = arith.constant 0 : i32
    %c0_i32_0 = arith.constant 0 : i32
    %c0_i32_1 = arith.constant 0 : i32
    return %c0_i32, %c0_i32_0 : i32, i32
  }
  func.func @transform_14(%arg0: i32) -> (i32, i32) {
    %c0_i32 = arith.constant 0 : i32
    %c0_i32_0 = arith.constant 0 : i32
    %c0_i32_1 = arith.constant 0 : i32
    return %c0_i32, %c0_i32_0 : i32, i32
  }
  func.func @transform_15(%arg0: i32) -> (i32, i32) {
    %c0_i32 = arith.constant 0 : i32
    %c0_i32_0 = arith.constant 0 : i32
    %c0_i32_1 = arith.constant 0 : i32
    return %c0_i32, %c0_i32_0 : i32, i32
  }
  func.func @transform_16(%arg0: i32) -> (i32, i32) {
    %c0_i32 = arith.constant 0 : i32
    %c0_i32_0 = arith.constant 0 : i32
    %c0_i32_1 = arith.constant 0 : i32
    return %c0_i32, %c0_i32_0 : i32, i32
  }
  func.func @transform_17(%arg0: i32) -> (i32, i32) {
    %c0_i32 = arith.constant 0 : i32
    %c0_i32_0 = arith.constant 0 : i32
    return %arg0, %c0_i32 : i32, i32
  }
}

</mosaic_0001>

<llo_original>
// kernel: ddaq_critic_forward.1
$region0: #{ddaq_critic_forward.1}
  #allocation0 [shape = 'u32[]', space=smem, size = 0x4, offset = 0x4, fixed_abs, tag = 'smem constant byte address 0x4 - core index']
  #allocation1 [shape = 'u32[144,128]{1,0:T(1,128)}', space=vmem, size = 0x12000, scoped, tag = 'internal scratch']
  %s0 = inlined_call_operand.hbm [shape: f32[8,24], index: 0, kind: input, shape index: {}]
  %s1 = inlined_call_operand.hbm [shape: f32[8,8], index: 1, kind: input, shape index: {}]
  %s2 = inlined_call_operand.hbm [shape: bf16[24,64], index: 2, kind: input, shape index: {}]
  %s3 = inlined_call_operand.vmem [shape: bf16[8,64], index: 3, kind: input, shape index: {}]
  %s4 = inlined_call_operand.vmem [shape: f32[1,64], index: 4, kind: input, shape index: {}]
  %s5 = inlined_call_operand.vmem [shape: f32[1,64], index: 5, kind: input, shape index: {}, may-alias: {5,9,13}]
  %s6 = inlined_call_operand.vmem [shape: f32[1,64], index: 6, kind: input, shape index: {}, may-alias: {6,10,14}]
  %s7 = inlined_call_operand.hbm [shape: bf16[64,64], index: 7, kind: input, shape index: {}]
  %s8 = inlined_call_operand.vmem [shape: f32[1,64], index: 8, kind: input, shape index: {}]
  %s9 = inlined_call_operand.vmem [shape: f32[1,64], index: 9, kind: input, shape index: {}, may-alias: {5,9,13}]
  %s10 = inlined_call_operand.vmem [shape: f32[1,64], index: 10, kind: input, shape index: {}, may-alias: {6,10,14}]
  %s11 = inlined_call_operand.hbm [shape: bf16[64,64], index: 11, kind: input, shape index: {}]
  %s12 = inlined_call_operand.vmem [shape: f32[1,64], index: 12, kind: input, shape index: {}]
  %s13 = inlined_call_operand.vmem [shape: f32[1,64], index: 13, kind: input, shape index: {}, may-alias: {5,9,13}]
  %s14 = inlined_call_operand.vmem [shape: f32[1,64], index: 14, kind: input, shape index: {}, may-alias: {6,10,14}]
  %s15 = inlined_call_operand.vmem [shape: f32[1,64], index: 15, kind: input, shape index: {}]
  %s16 = inlined_call_operand.vmem [shape: f32[1,2], index: 16, kind: input, shape index: {}]
  %s17 = inlined_call_operand.vmem [shape: f32[8,2], index: 17, kind: output, shape index: {}]
  %s18 = sld [smem:[#allocation0]]
  $region98: #{ddaq_critic_forward.1} parent=0
    _
  %s20 = ssub.s32 1, %s18
  %s21 = scalar_select 0, %s20, %s18
  $region1: #{ddaq_critic_forward.1} parent=0
    #allocation2 [shape = 'u8[4096]{0}', space=vmem, size = 0x1000, scoped, tag = 'input window, operand 0, single buffered']
    #allocation3 [shape = 's32[1]{0}', space=sflag, size = 0x4, scoped, tag = 'scoped memory for ddaq_critic_forward.1']
    #allocation4 [shape = 'u8[4096]{0}', space=vmem, size = 0x1000, scoped, tag = 'input window, operand 1, single buffered']
    #allocation5 [shape = 's32[1]{0}', space=sflag, size = 0x4, scoped, tag = 'scoped memory for ddaq_critic_forward.1']
    #allocation6 [shape = 'u8[6144]{0}', space=vmem, size = 0x1800, scoped, tag = 'input window, operand 2, single buffered']
    #allocation7 [shape = 'u8[16384]{0}', space=vmem, size = 0x4000, scoped, tag = 'input window, operand 7, single buffered']
    #allocation8 [shape = 's32[1]{0}', space=sflag, size = 0x4, scoped, tag = 'scoped memory for ddaq_critic_forward.1']
    #allocation9 [shape = 'u8[16384]{0}', space=vmem, size = 0x4000, scoped, tag = 'input window, operand 11, single buffered']
    %22 = vsyncpa [#allocation3], 0
    %23 = vsyncpa [#allocation5], 0
    %24 = vsyncpa [#allocation8], 0
    // Predicated region
    $region2: #{ddaq_critic_forward.1} parent=1 // pred_check
      _
    $region3: #{ddaq_critic_forward.1} parent=1 // pred_check_branch
      %26 = sbr.rel (0) target = $region5
    $region4: #{ddaq_critic_forward.1} parent=1 // pred_region
      %s28 = ssub.s32 128, 128
      %29 = vsyncadd [#allocation3], %s28
      %s31 = sshll.u32 [#allocation2], 4
      %s32 = int_to_ptr.vmem [resolvable:$true] %s31
      %34 = dma.hbm_to_vmem [thread:$0]  %s0, 128, %s32, [#allocation3]
    $region5: #{ddaq_critic_forward.1} parent=1 // pred_fallthru
      _
    // Predicated region
    $region6: #{ddaq_critic_forward.1} parent=1 // pred_check
      _
    $region7: #{ddaq_critic_forward.1} parent=1 // pred_check_branch
      %36 = sbr.rel (0) target = $region9
    $region8: #{ddaq_critic_forward.1} parent=1 // pred_region
      %s38 = ssub.s32 128, 128
      %39 = vsyncadd [#allocation5], %s38
      %s41 = sshll.u32 [#allocation4], 4
      %s42 = int_to_ptr.vmem [resolvable:$true] %s41
      %44 = dma.hbm_to_vmem [thread:$0]  %s1, 128, %s42, [#allocation5]
    $region9: #{ddaq_critic_forward.1} parent=1 // pred_fallthru
      _
    // Predicated region
    $region10: #{ddaq_critic_forward.1} parent=1 // pred_check
      _
    $region11: #{ddaq_critic_forward.1} parent=1 // pred_check_branch
      %46 = sbr.rel (0) target = $region13
    $region12: #{ddaq_critic_forward.1} parent=1 // pred_region
      %s48 = ssub.s32 192, 192
      %49 = vsyncadd [#allocation5], %s48
      %s50 = sshll.u32 [#allocation6], 4
      %s51 = int_to_ptr.vmem [resolvable:$true] %s50
      %56 = dma.hbm_to_vmem [thread:$0]  %s2, 192, %s51, [#allocation5], 64, 64, 4
    $region13: #{ddaq_critic_forward.1} parent=1 // pred_fallthru
      _
    // Predicated region
    $region14: #{ddaq_critic_forward.1} parent=1 // pred_check
      _
    $region15: #{ddaq_critic_forward.1} parent=1 // pred_check_branch
      %58 = sbr.rel (0) target = $region17
    $region16: #{ddaq_critic_forward.1} parent=1 // pred_region
      _
    $region17: #{ddaq_critic_forward.1} parent=1 // pred_fallthru
      _
    // Predicated region
    $region18: #{ddaq_critic_forward.1} parent=1 // pred_check
      _
    $region19: #{ddaq_critic_forward.1} parent=1 // pred_check_branch
      %60 = sbr.rel (0) target = $region21
    $region20: #{ddaq_critic_forward.1} parent=1 // pred_region
      _
    $region21: #{ddaq_critic_forward.1} parent=1 // pred_fallthru
      _
    // Predicated region
    $region22: #{ddaq_critic_forward.1} parent=1 // pred_check
      _
    $region23: #{ddaq_critic_forward.1} parent=1 // pred_check_branch
      %62 = sbr.rel (0) target = $region25
    $region24: #{ddaq_critic_forward.1} parent=1 // pred_region
      _
    $region25: #{ddaq_critic_forward.1} parent=1 // pred_fallthru
      _
    // Predicated region
    $region26: #{ddaq_critic_forward.1} parent=1 // pred_check
      _
    $region27: #{ddaq_critic_forward.1} parent=1 // pred_check_branch
      %64 = sbr.rel (0) target = $region29
    $region28: #{ddaq_critic_forward.1} parent=1 // pred_region
      _
    $region29: #{ddaq_critic_forward.1} parent=1 // pred_fallthru
      _
    // Predicated region
    $region30: #{ddaq_critic_forward.1} parent=1 // pred_check
      _
    $region31: #{ddaq_critic_forward.1} parent=1 // pred_check_branch
      %66 = sbr.rel (0) target = $region33
    $region32: #{ddaq_critic_forward.1} parent=1 // pred_region
      %s68 = ssub.s32 512, 512
      %69 = vsyncadd [#allocation8], %s68
      %s70 = sshll.u32 [#allocation7], 4
      %s71 = int_to_ptr.vmem [resolvable:$true] %s70
      %76 = dma.hbm_to_vmem [thread:$0]  %s7, 512, %s71, [#allocation8], 64, 64, 4
    $region33: #{ddaq_critic_forward.1} parent=1 // pred_fallthru
      _
    // Predicated region
    $region34: #{ddaq_critic_forward.1} parent=1 // pred_check
      _
    $region35: #{ddaq_critic_forward.1} parent=1 // pred_check_branch
      %78 = sbr.rel (0) target = $region37
    $region36: #{ddaq_critic_forward.1} parent=1 // pred_region
      _
    $region37: #{ddaq_critic_forward.1} parent=1 // pred_fallthru
      _
    // Predicated region
    $region38: #{ddaq_critic_forward.1} parent=1 // pred_check
      _
    $region39: #{ddaq_critic_forward.1} parent=1 // pred_check_branch
      %80 = sbr.rel (0) target = $region41
    $region40: #{ddaq_critic_forward.1} parent=1 // pred_region
      _
    $region41: #{ddaq_critic_forward.1} parent=1 // pred_fallthru
      _
    // Predicated region
    $region42: #{ddaq_critic_forward.1} parent=1 // pred_check
      _
    $region43: #{ddaq_critic_forward.1} parent=1 // pred_check_branch
      %82 = sbr.rel (0) target = $region45
    $region44: #{ddaq_critic_forward.1} parent=1 // pred_region
      _
    $region45: #{ddaq_critic_forward.1} parent=1 // pred_fallthru
      _
    // Predicated region
    $region46: #{ddaq_critic_forward.1} parent=1 // pred_check
      _
    $region47: #{ddaq_critic_forward.1} parent=1 // pred_check_branch
      %84 = sbr.rel (0) target = $region49
    $region48: #{ddaq_critic_forward.1} parent=1 // pred_region
      %s86 = ssub.s32 512, 512
      %87 = vsyncadd [#allocation8], %s86
      %s88 = sshll.u32 [#allocation9], 4
      %s89 = int_to_ptr.vmem [resolvable:$true] %s88
      %94 = dma.hbm_to_vmem [thread:$0]  %s11, 512, %s89, [#allocation8], 64, 64, 4
    $region49: #{ddaq_critic_forward.1} parent=1 // pred_fallthru
      _
    // Predicated region
    $region50: #{ddaq_critic_forward.1} parent=1 // pred_check
      _
    $region51: #{ddaq_critic_forward.1} parent=1 // pred_check_branch
      %96 = sbr.rel (0) target = $region53
    $region52: #{ddaq_critic_forward.1} parent=1 // pred_region
      _
    $region53: #{ddaq_critic_forward.1} parent=1 // pred_fallthru
      _
    // Predicated region
    $region54: #{ddaq_critic_forward.1} parent=1 // pred_check
      _
    $region55: #{ddaq_critic_forward.1} parent=1 // pred_check_branch
      %98 = sbr.rel (0) target = $region57
    $region56: #{ddaq_critic_forward.1} parent=1 // pred_region
      _
    $region57: #{ddaq_critic_forward.1} parent=1 // pred_fallthru
      _
    // Predicated region
    $region58: #{ddaq_critic_forward.1} parent=1 // pred_check
      _
    $region59: #{ddaq_critic_forward.1} parent=1 // pred_check_branch
      %100 = sbr.rel (0) target = $region61
    $region60: #{ddaq_critic_forward.1} parent=1 // pred_region
      _
    $region61: #{ddaq_critic_forward.1} parent=1 // pred_fallthru
      _
    // Predicated region
    $region62: #{ddaq_critic_forward.1} parent=1 // pred_check
      _
    $region63: #{ddaq_critic_forward.1} parent=1 // pred_check_branch
      %102 = sbr.rel (0) target = $region65
    $region64: #{ddaq_critic_forward.1} parent=1 // pred_region
      _
    $region65: #{ddaq_critic_forward.1} parent=1 // pred_fallthru
      _
    // Predicated region
    $region66: #{ddaq_critic_forward.1} parent=1 // pred_check
      _
    $region67: #{ddaq_critic_forward.1} parent=1 // pred_check_branch
      %104 = sbr.rel (0) target = $region69
    $region68: #{ddaq_critic_forward.1} parent=1 // pred_region
      _
    $region69: #{ddaq_critic_forward.1} parent=1 // pred_fallthru
      _
    // Predicated region
    $region70: #{ddaq_critic_forward.1} parent=1 // pred_check
      _
    $region71: #{ddaq_critic_forward.1} parent=1 // pred_check_branch
      %106 = sbr.rel (0) target = $region73
    $region72: #{ddaq_critic_forward.1} parent=1 // pred_region
      %107 = dma.done [#allocation3], 128
    $region73: #{ddaq_critic_forward.1} parent=1 // pred_fallthru
      _
    // Predicated region
    $region74: #{ddaq_critic_forward.1} parent=1 // pred_check
      _
    $region75: #{ddaq_critic_forward.1} parent=1 // pred_check_branch
      %109 = sbr.rel (0) target = $region77
    $region76: #{ddaq_critic_forward.1} parent=1 // pred_region
      %110 = dma.done [#allocation5], 128
    $region77: #{ddaq_critic_forward.1} parent=1 // pred_fallthru
      _
    // Predicated region
    $region78: #{ddaq_critic_forward.1} parent=1 // pred_check
      _
    $region79: #{ddaq_critic_forward.1} parent=1 // pred_check_branch
      %112 = sbr.rel (0) target = $region81
    $region80: #{ddaq_critic_forward.1} parent=1 // pred_region
      %113 = dma.done [#allocation5], 192
    $region81: #{ddaq_critic_forward.1} parent=1 // pred_fallthru
      _
    // Predicated region
    $region82: #{ddaq_critic_forward.1} parent=1 // pred_check
      _
    $region83: #{ddaq_critic_forward.1} parent=1 // pred_check_branch
      %115 = sbr.rel (0) target = $region85
    $region84: #{ddaq_critic_forward.1} parent=1 // pred_region
      %116 = dma.done [#allocation8], 512
    $region85: #{ddaq_critic_forward.1} parent=1 // pred_fallthru
      _
    // Predicated region
    $region86: #{ddaq_critic_forward.1} parent=1 // pred_check
      _
    $region87: #{ddaq_critic_forward.1} parent=1 // pred_check_branch
      %118 = sbr.rel (0) target = $region89
    $region88: #{ddaq_critic_forward.1} parent=1 // pred_region
      %119 = dma.done [#allocation8], 512
    $region89: #{ddaq_critic_forward.1} parent=1 // pred_fallthru
      _
    %v121 = vld [vmem:[#allocation2] sm:$0xff]
    %v122 = vpack.c.bf16 %v121, %v121
    %v123 = vld [vmem:[#allocation6] sm:$0xf]
    %v124 = vld [vmem:[#allocation6 + $0x4] sm:$0xf]
    %v125 = vld [vmem:[#allocation6 + $0x8] sm:$0xf]
    %v126 = vld [vmem:[#allocation4] sm:$0xff]
    %v127 = vpack.c.bf16 %v126, %v126
    %v128 = vld [vmem:[%s3] sm:$0xf]
    %vm129 = vcmask 64512
    %v131 = vsel %vm129, %v127, 0
    %vm133 = vcmask 1043456
    %v135 = vsel %vm133, %v128, 0
    %137 = vmatprep.subr.bf16.mxu0 0
    %138 = vmatpush1.bf16.msra.mxu0 0
    %139 = vmatprep.subr.bf16.mxu0 0
    %140 = vmatpush1.bf16.msra.mxu0 0
    %141 = vmatprep.subr.bf16.mxu0 0
    %142 = vmatpush1.bf16.msra.mxu0 0
    %143 = vmatprep.subr.bf16.mxu0 0
    %144 = vmatpush1.bf16.msra.mxu0 0
    %145 = vmatprep.subr.bf16.mxu0 0
    %146 = vmatpush1.bf16.msra.mxu0 0
    %147 = vmatprep.subr.bf16.mxu0 0
    %148 = vmatpush1.bf16.msra.mxu0 0
    %149 = vmatprep.subr.bf16.mxu0 0
    %150 = vmatpush1.bf16.msra.mxu0 0
    %151 = vmatprep.subr.bf16.mxu0 0
    %152 = vmatpush1.bf16.msra.mxu0 %v135
    %153 = vmatprep.subr.bf16.mxu0 0
    %154 = vmatpush2.bf16.msra.mxu0 0
    %155 = vmatprep.subr.bf16.mxu0 0
    %156 = vmatpush2.bf16.msra.mxu0 0
    %157 = vmatprep.subr.bf16.mxu0 0
    %158 = vmatpush2.bf16.msra.mxu0 0
    %159 = vmatprep.subr.bf16.mxu0 0
    %160 = vmatpush2.bf16.msra.mxu0 0
    %161 = vmatprep.subr.bf16.mxu0 0
    %162 = vmatpush2.bf16.msra.mxu0 0
    %163 = vmatprep.subr.bf16.mxu0 0
    %164 = vmatpush2.bf16.msra.mxu0 0
    %165 = vmatprep.subr.bf16.mxu0 0
    %166 = vmatpush2.bf16.msra.mxu0 0
    %167 = vmatprep.subr.bf16.mxu0 0
    %168 = vmatpush2.bf16.msra.mxu0 0
    %169 = vmatprep.mubr.bf16.mxu0 0
    %170 = vmatmul.mubr.bf16.gmra.mxu0 %v131
    %v171 = vpop.f32.mrf.mxu0
    %v172 = vadd.f32 0.0, %v171
    %v173 = vpop.f32.mrf.mxu0
    %v174 = vpop.f32.mrf.mxu0
    %v175 = vpop.f32.mrf.mxu0
    %176 = vdwg.mxu0
    %v180 = vunpack.c.l.b16 %v123
    %v181 = vunpack.c.l.b16 %v124
    %v182 = vunpack.c.l.b16 %v125
    %v183 = vpack.c.b16 %v181, %v180
    %v184 = vpack.c.b16 %v182, %v182
    %vm186 = vcmask 195584
    %v188 = vsel %vm186, %v122, 0
    %v191 = vsel %vm133, %v184, 0
    %193 = vmatprep.subr.bf16.mxu0 0
    %194 = vmatpush1.bf16.msra.mxu0 0
    %195 = vmatprep.subr.bf16.mxu0 0
    %196 = vmatpush1.bf16.msra.mxu0 0
    %197 = vmatprep.subr.bf16.mxu0 0
    %198 = vmatpush1.bf16.msra.mxu0 0
    %199 = vmatprep.subr.bf16.mxu0 0
    %200 = vmatpush1.bf16.msra.mxu0 0
    %201 = vmatprep.subr.bf16.mxu0 0
    %202 = vmatpush1.bf16.msra.mxu0 0
    %203 = vmatprep.subr.bf16.mxu0 0
    %204 = vmatpush1.bf16.msra.mxu0 0
    %205 = vmatprep.subr.bf16.mxu0 0
    %206 = vmatpush1.bf16.msra.mxu0 %v191
    %207 = vmatprep.subr.bf16.mxu0 0
    %208 = vmatpush1.bf16.msra.mxu0 %v183
    %209 = vmatprep.subr.bf16.mxu0 0
    %210 = vmatpush2.bf16.msra.mxu0 0
    %211 = vmatprep.subr.bf16.mxu0 0
    %212 = vmatpush2.bf16.msra.mxu0 0
    %213 = vmatprep.subr.bf16.mxu0 0
    %214 = vmatpush2.bf16.msra.mxu0 0
    %215 = vmatprep.subr.bf16.mxu0 0
    %216 = vmatpush2.bf16.msra.mxu0 0
    %217 = vmatprep.subr.bf16.mxu0 0
    %218 = vmatpush2.bf16.msra.mxu0 0
    %219 = vmatprep.subr.bf16.mxu0 0
    %220 = vmatpush2.bf16.msra.mxu0 0
    %221 = vmatprep.subr.bf16.mxu0 0
    %222 = vmatpush2.bf16.msra.mxu0 0
    %223 = vmatprep.subr.bf16.mxu0 0
    %224 = vmatpush2.bf16.msra.mxu0 0
    %225 = vmatprep.mubr.bf16.mxu0 0
    %226 = vmatmul.mubr.bf16.gmra.mxu0 %v188
    %v227 = vpop.f32.mrf.mxu0
    %v228 = vadd.f32 %v172, %v227
    %v229 = vpop.f32.mrf.mxu0
    %v230 = vpop.f32.mrf.mxu0
    %v231 = vpop.f32.mrf.mxu0
    %232 = vdwg.mxu0
    %v233 = vld [vmem:[%s4] sm:$0x1]
    %v235 = vlaneseq
    %v236 = vshrl.u32 %v235, 7
    %v237 = vsub.s32 0, %v236
    %v238 = vrot.slane %v233, %v237
    %v240 = vadd.f32 %v228, %v238
    %v241 = vld [vmem:[%s5] sm:$0x1]
    %v242 = vld [vmem:[%s6] sm:$0x1]
    %vm243 = vcmask 261120
    %v244 = vsel %vm243, %v240, 0.0
    %245 = vadd.xlane.f32.xlu0 %v244
    %v246 = vpop.xlane.xlu0 %245
    %v247 = vrcp.pop 32.0
    %v248 = vmul.f32 %v246, %v247
    %250 = vrot.lane.b32.xlu0 %v240, 96
    %v251 = vpop.permute.xlu0 %250
    %v253 = vsel %vm243, %v251, 0.0
    %254 = vadd.xlane.f32.xlu0 %v253
    %v255 = vpop.xlane.xlu0 %254
    %v256 = vmul.f32 %v255, %v247
    %v257 = vsub.f32 %v240, %v248
    %v258 = vmul.f32 %v257, %v257
    %v259 = vsel %vm243, %v258, 0.0
    %260 = vadd.xlane.f32.xlu0 %v259
    %v261 = vpop.xlane.xlu0 %260
    %v262 = vmul.f32 %v261, %v247
    %v263 = vsub.f32 %v240, %v256
    %v264 = vmul.f32 %v263, %v263
    %266 = vrot.lane.b32.xlu0 %v264, 96
    %v267 = vpop.permute.xlu0 %266
    %v269 = vsel %vm243, %v267, 0.0
    %270 = vadd.xlane.f32.xlu0 %v269
    %v271 = vpop.xlane.xlu0 %270
    %v272 = vmul.f32 %v271, %v247
    %v273 = vlaneseq
    %v274 = vand.u32 %v273, 127
    %vm275 = vcmp.ge.s32.totalorder %v274, 32
    %v276 = vsel %vm275, %v256, %v248
    %v277 = vadd.f32 %v272, 1e-05
    %v278 = vrsqrt.pop %v277
    %v279 = vadd.f32 %v262, 1e-05
    %v280 = vrsqrt.pop %v279
    %v281 = vsel %vm275, %v278, %v280
    %v282 = vsub.f32 %v240, %v276
    %v283 = vmul.f32 %v282, %v281
    %v285 = vlaneseq
    %v286 = vshrl.u32 %v285, 7
    %v287 = vsub.s32 0, %v286
    %v288 = vrot.slane %v241, %v287
    %v290 = vmul.f32 %v283, %v288
    %v292 = vlaneseq
    %v293 = vshrl.u32 %v292, 7
    %v294 = vsub.s32 0, %v293
    %v295 = vrot.slane %v242, %v294
    %v297 = vadd.f32 %v290, %v295
    %v298 = vtanh.pop %v297
    %v299 = vpack.c.bf16 %v298, %v298
    %v300 = vld [vmem:[#allocation7] sm:$0xf]
    %v301 = vld [vmem:[#allocation7 + $0x4] sm:$0xf]
    %v302 = vld [vmem:[#allocation7 + $0x8] sm:$0xf]
    %v303 = vld [vmem:[#allocation7 + $0xc] sm:$0xf]
    %v304 = vld [vmem:[#allocation7 + $0x10] sm:$0xf]
    %v305 = vld [vmem:[#allocation7 + $0x14] sm:$0xf]
    %v306 = vld [vmem:[#allocation7 + $0x18] sm:$0xf]
    %v307 = vld [vmem:[#allocation7 + $0x1c] sm:$0xf]
    %v308 = vld [vmem:[%s8] sm:$0x1]
    %v310 = vlaneseq
    %v311 = vshrl.u32 %v310, 7
    %v312 = vsub.s32 0, %v311
    %v313 = vrot.slane %v308, %v312
    %v323 = vunpack.c.l.b16 %v300
    %v324 = vunpack.c.l.b16 %v301
    %v325 = vunpack.c.l.b16 %v302
    %v326 = vunpack.c.l.b16 %v303
    %v327 = vunpack.c.l.b16 %v304
    %v328 = vunpack.c.l.b16 %v305
    %v329 = vunpack.c.l.b16 %v306
    %v330 = vunpack.c.l.b16 %v307
    %v331 = vpack.c.b16 %v324, %v323
    %v332 = vpack.c.b16 %v326, %v325
    %v333 = vpack.c.b16 %v328, %v327
    %v334 = vpack.c.b16 %v330, %v329
    %vm339 = vcmask 523264
    %v341 = vsel %vm339, %v299, 0
    %343 = vmatprep.subr.bf16.mxu0 0
    %344 = vmatpush1.bf16.msra.mxu0 0
    %345 = vmatprep.subr.bf16.mxu0 0
    %346 = vmatpush1.bf16.msra.mxu0 0
    %347 = vmatprep.subr.bf16.mxu0 0
    %348 = vmatpush1.bf16.msra.mxu0 0
    %349 = vmatprep.subr.bf16.mxu0 0
    %350 = vmatpush1.bf16.msra.mxu0 0
    %351 = vmatprep.subr.bf16.mxu0 0
    %352 = vmatpush1.bf16.msra.mxu0 %v334
    %353 = vmatprep.subr.bf16.mxu0 0
    %354 = vmatpush1.bf16.msra.mxu0 %v333
    %355 = vmatprep.subr.bf16.mxu0 0
    %356 = vmatpush1.bf16.msra.mxu0 %v332
    %357 = vmatprep.subr.bf16.mxu0 0
    %358 = vmatpush1.bf16.msra.mxu0 %v331
    %359 = vmatprep.subr.bf16.mxu0 0
    %360 = vmatpush2.bf16.msra.mxu0 0
    %361 = vmatprep.subr.bf16.mxu0 0
    %362 = vmatpush2.bf16.msra.mxu0 0
    %363 = vmatprep.subr.bf16.mxu0 0
    %364 = vmatpush2.bf16.msra.mxu0 0
    %365 = vmatprep.subr.bf16.mxu0 0
    %366 = vmatpush2.bf16.msra.mxu0 0
    %367 = vmatprep.subr.bf16.mxu0 0
    %368 = vmatpush2.bf16.msra.mxu0 0
    %369 = vmatprep.subr.bf16.mxu0 0
    %370 = vmatpush2.bf16.msra.mxu0 0
    %371 = vmatprep.subr.bf16.mxu0 0
    %372 = vmatpush2.bf16.msra.mxu0 0
    %373 = vmatprep.subr.bf16.mxu0 0
    %374 = vmatpush2.bf16.msra.mxu0 0
    %375 = vmatprep.mubr.bf16.mxu0 0
    %376 = vmatmul.mubr.bf16.gmra.mxu0 %v341
    %v377 = vpop.f32.mrf.mxu0
    %v378 = vadd.f32 %v313, %v377
    %v379 = vpop.f32.mrf.mxu0
    %v380 = vpop.f32.mrf.mxu0
    %v381 = vpop.f32.mrf.mxu0
    %382 = vdwg.mxu0
    %v383 = vld [vmem:[%s9] sm:$0x1]
    %v384 = vld [vmem:[%s10] sm:$0x1]
    %v385 = vsel %vm243, %v378, 0.0
    %386 = vadd.xlane.f32.xlu0 %v385
    %v387 = vpop.xlane.xlu0 %386
    %v388 = vmul.f32 %v387, %v247
    %390 = vrot.lane.b32.xlu0 %v378, 96
    %v391 = vpop.permute.xlu0 %390
    %v393 = vsel %vm243, %v391, 0.0
    %394 = vadd.xlane.f32.xlu0 %v393
    %v395 = vpop.xlane.xlu0 %394
    %v396 = vmul.f32 %v395, %v247
    %v397 = vsub.f32 %v378, %v388
    %v398 = vmul.f32 %v397, %v397
    %v399 = vsel %vm243, %v398, 0.0
    %400 = vadd.xlane.f32.xlu0 %v399
    %v401 = vpop.xlane.xlu0 %400
    %v402 = vmul.f32 %v401, %v247
    %v403 = vsub.f32 %v378, %v396
    %v404 = vmul.f32 %v403, %v403
    %406 = vrot.lane.b32.xlu0 %v404, 96
    %v407 = vpop.permute.xlu0 %406
    %v409 = vsel %vm243, %v407, 0.0
    %410 = vadd.xlane.f32.xlu0 %v409
    %v411 = vpop.xlane.xlu0 %410
    %v412 = vmul.f32 %v411, %v247
    %v413 = vsel %vm275, %v396, %v388
    %v414 = vadd.f32 %v412, 1e-05
    %v415 = vrsqrt.pop %v414
    %v416 = vadd.f32 %v402, 1e-05
    %v417 = vrsqrt.pop %v416
    %v418 = vsel %vm275, %v415, %v417
    %v419 = vsub.f32 %v378, %v413
    %v420 = vmul.f32 %v419, %v418
    %v422 = vlaneseq
    %v423 = vshrl.u32 %v422, 7
    %v424 = vsub.s32 0, %v423
    %v425 = vrot.slane %v383, %v424
    %v427 = vmul.f32 %v420, %v425
    %v429 = vlaneseq
    %v430 = vshrl.u32 %v429, 7
    %v431 = vsub.s32 0, %v430
    %v432 = vrot.slane %v384, %v431
    %v434 = vadd.f32 %v427, %v432
    %v435 = vmin.f32 %v434, 20.0
    %v436 = vmul.f32 %v435, 1.442695
    %v437 = vpow.pop %v436
    %v438 = vadd.f32 %v437, 1.0
    %v439 = vmul.f32 %v438, %v438
    %v440 = vadd.f32 %v439, 1.0
    %v441 = vrcp.pop %v440
    %v442 = vmul.f32 %v440, %v441
    %v443 = vsub.f32 2.0, %v442
    %v444 = vmul.f32 %v441, %v443
    %v445 = vmul.f32 %v434, 2.0
    %v446 = vmul.f32 %v445, %v444
    %v447 = vsub.f32 %v434, %v446
    %v448 = vpack.c.bf16 %v447, %v447
    %v449 = vld [vmem:[#allocation9] sm:$0xf]
    %v450 = vld [vmem:[#allocation9 + $0x4] sm:$0xf]
    %v451 = vld [vmem:[#allocation9 + $0x8] sm:$0xf]
    %v452 = vld [vmem:[#allocation9 + $0xc] sm:$0xf]
    %v453 = vld [vmem:[#allocation9 + $0x10] sm:$0xf]
    %v454 = vld [vmem:[#allocation9 + $0x14] sm:$0xf]
    %v455 = vld [vmem:[#allocation9 + $0x18] sm:$0xf]
    %v456 = vld [vmem:[#allocation9 + $0x1c] sm:$0xf]
    %v457 = vld [vmem:[%s12] sm:$0x1]
    %v459 = vlaneseq
    %v460 = vshrl.u32 %v459, 7
    %v461 = vsub.s32 0, %v460
    %v462 = vrot.slane %v457, %v461
    %v472 = vunpack.c.l.b16 %v449
    %v473 = vunpack.c.l.b16 %v450
    %v474 = vunpack.c.l.b16 %v451
    %v475 = vunpack.c.l.b16 %v452
    %v476 = vunpack.c.l.b16 %v453
    %v477 = vunpack.c.l.b16 %v454
    %v478 = vunpack.c.l.b16 %v455
    %v479 = vunpack.c.l.b16 %v456
    %v480 = vpack.c.b16 %v473, %v472
    %v481 = vpack.c.b16 %v475, %v474
    %v482 = vpack.c.b16 %v477, %v476
    %v483 = vpack.c.b16 %v479, %v478
    %v489 = vsel %vm339, %v448, 0
    %491 = vmatprep.subr.bf16.mxu0 0
    %492 = vmatpush1.bf16.msra.mxu0 0
    %493 = vmatprep.subr.bf16.mxu0 0
    %494 = vmatpush1.bf16.msra.mxu0 0
    %495 = vmatprep.subr.bf16.mxu0 0
    %496 = vmatpush1.bf16.msra.mxu0 0
    %497 = vmatprep.subr.bf16.mxu0 0
    %498 = vmatpush1.bf16.msra.mxu0 0
    %499 = vmatprep.subr.bf16.mxu0 0
    %500 = vmatpush1.bf16.msra.mxu0 %v483
    %501 = vmatprep.subr.bf16.mxu0 0
    %502 = vmatpush1.bf16.msra.mxu0 %v482
    %503 = vmatprep.subr.bf16.mxu0 0
    %504 = vmatpush1.bf16.msra.mxu0 %v481
    %505 = vmatprep.subr.bf16.mxu0 0
    %506 = vmatpush1.bf16.msra.mxu0 %v480
    %507 = vmatprep.subr.bf16.mxu0 0
    %508 = vmatpush2.bf16.msra.mxu0 0
    %509 = vmatprep.subr.bf16.mxu0 0
    %510 = vmatpush2.bf16.msra.mxu0 0
    %511 = vmatprep.subr.bf16.mxu0 0
    %512 = vmatpush2.bf16.msra.mxu0 0
    %513 = vmatprep.subr.bf16.mxu0 0
    %514 = vmatpush2.bf16.msra.mxu0 0
    %515 = vmatprep.subr.bf16.mxu0 0
    %516 = vmatpush2.bf16.msra.mxu0 0
    %517 = vmatprep.subr.bf16.mxu0 0
    %518 = vmatpush2.bf16.msra.mxu0 0
    %519 = vmatprep.subr.bf16.mxu0 0
    %520 = vmatpush2.bf16.msra.mxu0 0
    %521 = vmatprep.subr.bf16.mxu0 0
    %522 = vmatpush2.bf16.msra.mxu0 0
    %523 = vmatprep.mubr.bf16.mxu0 0
    %524 = vmatmul.mubr.bf16.gmra.mxu0 %v489
    %v525 = vpop.f32.mrf.mxu0
    %v526 = vadd.f32 %v462, %v525
    %v527 = vpop.f32.mrf.mxu0
    %v528 = vpop.f32.mrf.mxu0
    %v529 = vpop.f32.mrf.mxu0
    %530 = vdwg.mxu0
    %v531 = vld [vmem:[%s13] sm:$0x1]
    %v532 = vld [vmem:[%s14] sm:$0x1]
    %v533 = vsel %vm243, %v526, 0.0
    %534 = vadd.xlane.f32.xlu0 %v533
    %v535 = vpop.xlane.xlu0 %534
    %v536 = vmul.f32 %v535, %v247
    %538 = vrot.lane.b32.xlu0 %v526, 96
    %v539 = vpop.permute.xlu0 %538
    %v541 = vsel %vm243, %v539, 0.0
    %542 = vadd.xlane.f32.xlu0 %v541
    %v543 = vpop.xlane.xlu0 %542
    %v544 = vmul.f32 %v543, %v247
    %v545 = vsub.f32 %v526, %v536
    %v546 = vmul.f32 %v545, %v545
    %v547 = vsel %vm243, %v546, 0.0
    %548 = vadd.xlane.f32.xlu0 %v547
    %v549 = vpop.xlane.xlu0 %548
    %v550 = vmul.f32 %v549, %v247
    %v551 = vsub.f32 %v526, %v544
    %v552 = vmul.f32 %v551, %v551
    %554 = vrot.lane.b32.xlu0 %v552, 96
    %v555 = vpop.permute.xlu0 %554
    %v557 = vsel %vm243, %v555, 0.0
    %558 = vadd.xlane.f32.xlu0 %v557
    %v559 = vpop.xlane.xlu0 %558
    %v560 = vmul.f32 %v559, %v247
    %v561 = vsel %vm275, %v544, %v536
    %v562 = vadd.f32 %v560, 1e-05
    %v563 = vrsqrt.pop %v562
    %v564 = vadd.f32 %v550, 1e-05
    %v565 = vrsqrt.pop %v564
    %v566 = vsel %vm275, %v563, %v565
    %v567 = vsub.f32 %v526, %v561
    %v568 = vmul.f32 %v567, %v566
    %v570 = vlaneseq
    %v571 = vshrl.u32 %v570, 7
    %v572 = vsub.s32 0, %v571
    %v573 = vrot.slane %v531, %v572
    %v575 = vmul.f32 %v568, %v573
    %v577 = vlaneseq
    %v578 = vshrl.u32 %v577, 7
    %v579 = vsub.s32 0, %v578
    %v580 = vrot.slane %v532, %v579
    %v582 = vadd.f32 %v575, %v580
    %v583 = vmin.f32 %v582, 20.0
    %v584 = vmul.f32 %v583, 1.442695
    %v585 = vpow.pop %v584
    %v586 = vadd.f32 %v585, 1.0
    %v587 = vmul.f32 %v586, %v586
    %v588 = vadd.f32 %v587, 1.0
    %v589 = vrcp.pop %v588
    %v590 = vmul.f32 %v588, %v589
    %v591 = vsub.f32 2.0, %v590
    %v592 = vmul.f32 %v589, %v591
    %v593 = vmul.f32 %v582, 2.0
    %v594 = vmul.f32 %v593, %v592
    %v595 = vsub.f32 %v582, %v594
    %v596 = vld [vmem:[%s15] sm:$0x1]
    %v598 = vlaneseq
    %v599 = vshrl.u32 %v598, 7
    %v600 = vsub.s32 0, %v599
    %v601 = vrot.slane %v596, %v600
    %v603 = vmul.f32 %v595, %v601
    %v604 = vsel %vm243, %v603, 0.0
    %605 = vadd.xlane.f32.xlu0 %v604
    %v606 = vpop.xlane.xlu0 %605
    %608 = vrot.lane.b32.xlu0 %v603, 96
    %v609 = vpop.permute.xlu0 %608
    %v611 = vsel %vm243, %v609, 0.0
    %612 = vadd.xlane.f32.xlu0 %v611
    %v613 = vpop.xlane.xlu0 %612
    %vm614 = vcmask 7168
    %v615 = vsel %vm614, %v606, %v613
    %v616 = vld [vmem:[%s16] sm:$0x1]
    %v618 = vlaneseq
    %v619 = vshrl.u32 %v618, 7
    %v620 = vsub.s32 0, %v619
    %v621 = vrot.slane %v616, %v620
    %v623 = vadd.f32 %v615, %v621
    %vm624 = vcmask 15360
    %625 = vst.msk [vmem:[%s17] sm:$0xff] %vm624, %v623
    // Predicated region
    $region90: #{ddaq_critic_forward.1} parent=1 // pred_check
      _
    $region91: #{ddaq_critic_forward.1} parent=1 // pred_check_branch
      %627 = sbr.rel (0) target = $region93
    $region92: #{ddaq_critic_forward.1} parent=1 // pred_region
      _
    $region93: #{ddaq_critic_forward.1} parent=1 // pred_fallthru
      _
    // Predicated region
    $region94: #{ddaq_critic_forward.1} parent=1 // pred_check
      _
    $region95: #{ddaq_critic_forward.1} parent=1 // pred_check_branch
      %629 = sbr.rel (0) target = $region97
    $region96: #{ddaq_critic_forward.1} parent=1 // pred_region
      _
    $region97: #{ddaq_critic_forward.1} parent=1 // pred_fallthru
      _
    %630 = vsyncpa [#allocation3], 1
    %631 = vsyncpa [#allocation5], 1
    %632 = vsyncpa [#allocation8], 1

</llo_original>
